<compile_context>
chip_gen: v7x
topology: tpu7x:2x2x1
jax: 0.10.0
libtpu: 0.0.40
codegen_flags: <defaults>
</compile_context>

<pallas_src>
import jax
import jax.numpy as jnp
from jax.experimental import pallas as pl
from jax.experimental.pallas import tpu as pltpu


# ---------------------------------------------------------------------------
# Generation-aware VMEM sizing
# ---------------------------------------------------------------------------

def _vmem_limits():
    """Returns (tile_budget_bytes, vmem_limit_bytes) scaled to this chip's VMEM."""
    try:
        vmem_phys = int(pltpu.get_tpu_info().vmem_capacity_bytes)
    except Exception:
        vmem_phys = 64 * 1024 * 1024  # conservative default (v7x: 64 MiB per TC)
    # ~1/4 of physical VMEM for the double-buffered working set, ~1/2 as the
    # scoped limit: 32/64 MiB on v5e/v6e (128 MiB VMEM), 16/32 MiB on v7x.
    budget = min(max(vmem_phys // 4, 8 * 1024 * 1024), 32 * 1024 * 1024)
    limit = min(max(vmem_phys // 2, 16 * 1024 * 1024), 64 * 1024 * 1024)
    return budget, limit


def _sublane_pack(itemsize):
    # elements per packed sublane row: 8 (f32), 16 (bf16/f16), 32 (int8/fp8)
    return (8 * 4) // max(1, itemsize)


def _choose_tile(b_pre, b_post, c_total, itemsize, budget_bytes):
    """Lane tile size: as big as the VMEM budget allows, no tiny masked tails,
    and >= 2 total grid steps so v7x's two TensorCores both get work."""
    if b_post <= 128:
        # Degenerate layout; caller normally falls back before reaching here.
        return b_post
    # Per grid step: (sum C_i + C_total) * TILE = 2*C_total*TILE elements,
    # double-buffered by the pipeline -> ~4*C_total*TILE*itemsize bytes.
    max_tile = max(128, budget_bytes // (4 * c_total * itemsize))
    # Megacore: if the b_pre axis can't split work across cores, the lane axis must.
    min_tiles = 1 if b_pre >= 2 else 2
    n_tiles = max(min_tiles, pl.cdiv(b_post, max_tile))
    if n_tiles == 1:
        # Single full-extent block: legal per the (8,128) rule (block dim ==
        # array dim), no masked tail, no extra pipeline step.
        return b_post
    tile = pl.cdiv(b_post, n_tiles)
    tile = ((tile + 127) // 128) * 128      # 128-lane multiple -> unmasked stores
    return min(tile, b_post)


# ---------------------------------------------------------------------------
# Gridded, BlockSpec-pipelined copy (default path)
# ---------------------------------------------------------------------------

def _make_concat_kernel(offsets, sizes):
    """All refs are (1, C_*, TILE) VMEM blocks; the concat (channel) axis is
    fully resident in every block, so offsets/sizes are static ints."""

    def kernel(*refs):
        out_ref = refs[-1]
        in_refs = refs[:-1]
        for r, off, sz in zip(in_refs, offsets, sizes):
            out_ref[:, off:off + sz, :] = r[...]

    return kernel


def _concat_pallas_3d(xs3, sizes, offsets, c_total, budget_bytes, limit_bytes):
    """xs3: list of (B_pre, C_i, B_post) arrays -> (B_pre, C_total, B_post)."""
    b_pre, _, b_post = xs3[0].shape
    dtype = xs3[0].dtype
    itemsize = jnp.dtype(dtype).itemsize

    tile = _choose_tile(b_pre, b_post, c_total, itemsize, budget_bytes)
    grid = (b_pre, pl.cdiv(b_post, tile))

    in_specs = [
        pl.BlockSpec((1, c, tile), lambda n, t: (n, 0, t)) for c in sizes
    ]
    out_spec = pl.BlockSpec((1, c_total, tile), lambda n, t: (n, 0, t))

    kernel = _make_concat_kernel(tuple(offsets), tuple(sizes))

    return pl.pallas_call(
        kernel,
        out_shape=jax.ShapeDtypeStruct((b_pre, c_total, b_post), dtype),
        grid_spec=pltpu.PrefetchScalarGridSpec(
            num_scalar_prefetch=0,
            grid=grid,
            in_specs=in_specs,
            out_specs=out_spec,
        ),
        compiler_params=pltpu.CompilerParams(
            dimension_semantics=("parallel", "parallel"),
            vmem_limit_bytes=limit_bytes,
        ),
    )(*xs3)


# ---------------------------------------------------------------------------
# HBM -> HBM DMA variant (opt-in): one strided copy per input, no VMEM round trip.
# Biggest relative payoff on v7x (64 MiB VMEM, 3.2 TB/s HBM).
# ---------------------------------------------------------------------------

def _make_hbm_dma_kernel(offsets, sizes):
    def kernel(*refs):
        sem = refs[-1]
        out_ref = refs[-2]
        in_refs = refs[:-2]
        copies = []
        for i, (r, off, sz) in enumerate(zip(in_refs, offsets, sizes)):
            cp = pltpu.make_async_copy(r, out_ref.at[:, off:off + sz, :], sem.at[i])
            cp.start()
            copies.append(cp)
        for cp in copies:
            cp.wait()

    return kernel


def _concat_hbm_dma_3d(xs3, sizes, offsets, c_total):
    b_pre, _, b_post = xs3[0].shape
    dtype = xs3[0].dtype
    n_in = len(xs3)
    kernel = _make_hbm_dma_kernel(tuple(offsets), tuple(sizes))
    return pl.pallas_call(
        kernel,
        out_shape=jax.ShapeDtypeStruct((b_pre, c_total, b_post), dtype),
        in_specs=[pl.BlockSpec(memory_space=pl.ANY) for _ in xs3],
        out_specs=pl.BlockSpec(memory_space=pl.ANY),
        scratch_shapes=[pltpu.SemaphoreType.DMA((n_in,))],
        compiler_params=pltpu.CompilerParams(has_side_effects=True),
    )(*xs3)


# ---------------------------------------------------------------------------
# Dispatch wrapper (torch.cat semantics)
# ---------------------------------------------------------------------------

def concat_pallas(xs, dimension=1, force_pallas=False, use_hbm_dma=False,
                  min_pallas_bytes=1 << 20):
    """Pallas equivalent of Concat(dimension).forward(xs) == torch.cat(xs, dimension)."""
    xs = list(xs)
    assert len(xs) >= 1
    ndim = xs[0].ndim
    dim = dimension % ndim
    dtype = xs[0].dtype

    # torch.cat contract: all non-concat dims and dtypes must match.
    for x in xs:
        assert x.ndim == ndim
        assert x.dtype == dtype
        for ax in range(ndim):
            if ax != dim:
                assert x.shape[ax] == xs[0].shape[ax]

    sizes = [x.shape[dim] for x in xs]
    offsets = []
    acc = 0
    for s in sizes:
        offsets.append(acc)
        acc += s
    c_total = acc

    itemsize = jnp.dtype(dtype).itemsize
    total_bytes = sum(x.size for x in xs) * itemsize

    # Collapsed layout: (B_pre, C_i, B_post); concat axis stays on sublanes,
    # the trailing lane axis is the (large) spatial product.
    b_pre = 1
    for s in xs[0].shape[:dim]:
        b_pre *= s
    b_post = 1
    for s in xs[0].shape[dim + 1:]:
        b_post *= s

    budget_bytes, limit_bytes = _vmem_limits()
    pack = _sublane_pack(itemsize)
    aligned = all(off % pack == 0 for off in offsets)

    # --- dispatch -----------------------------------------------------------
    # Structural guards (always): lane-starved layouts (last-dim concat, tiny
    # spatial) and channel blocks too large for VMEM never reach the kernel.
    min_lane = min(b_post, 128)
    min_workset = 4 * c_total * min_lane * itemsize
    structurally_ok = (b_post >= 128) and (min_workset <= limit_bytes)

    # Heuristic guards (bypassed by force_pallas): tiny tensors and misaligned
    # channel offsets are faster / cleaner through XLA's fused concat.
    heuristically_ok = (total_bytes >= min_pallas_bytes) and aligned

    if not structurally_ok or not (heuristically_ok or force_pallas):
        # TODO(synk): at the graph level this copy can often be fused away
        # entirely (producers writing into pre-offset output slices); the
        # Pallas path should only be used where XLA's fused concat loses.
        return jnp.concatenate(xs, axis=dim)

    xs3 = [x.reshape(b_pre, x.shape[dim], b_post) for x in xs]
    if use_hbm_dma and aligned:
        out3 = _concat_hbm_dma_3d(xs3, sizes, offsets, c_total)
    else:
        out3 = _concat_pallas_3d(xs3, sizes, offsets, c_total,
                                 budget_bytes, limit_bytes)

    out_shape = list(xs[0].shape)
    out_shape[dim] = c_total
    return out3.reshape(tuple(out_shape))


class Concat:
    """Mirror of the PyTorch module: Concat(dimension).forward(x) -> cat(x, dim)."""

    def __init__(self, dimension=1):
        self.d = dimension

    def __call__(self, x, **kwargs):
        return concat_pallas(x, self.d, **kwargs)


if __name__ == "__main__":
    key = jax.random.PRNGKey(0)
    k1, k2, k3 = jax.random.split(key, 3)

    # NCHW inputs with differing (sublane-aligned) channel counts, as produced
    # by YOLO feature maps. b_post = 16*16 = 256 -> lane-dense stores.
    x1 = jax.random.normal(k1, (2, 8, 16, 16), dtype=jnp.float32)
    x2 = jax.random.normal(k2, (2, 16, 16, 16), dtype=jnp.float32)
    x3 = jax.random.normal(k3, (2, 8, 16, 16), dtype=jnp.float32)

    concat = Concat(dimension=1)
    ref = jnp.concatenate([x1, x2, x3], axis=1)

    # Force the gridded Pallas kernel (shapes here are tiny; the default
    # dispatch would fall back to jnp.concatenate for speed).
    out = jax.block_until_ready(concat([x1, x2, x3], force_pallas=True))
    assert out.shape == (2, 32, 16, 16)
    assert jnp.array_equal(out, ref)

    # Default (dispatching) path for completeness.
    out2 = jax.block_until_ready(concat([x1, x2, x3]))
    assert jnp.array_equal(out2, ref)

    print("KERNEL_OK")
</pallas_src>

<mosaic_0001>
module attributes {stable_mosaic.version = 11 : i64} {
  func.func @kernel(%arg0: i32, %arg1: i32, %arg2: memref<1x8x256xf32, #tpu.memory_space<vmem>>, %arg3: memref<1x16x256xf32, #tpu.memory_space<vmem>>, %arg4: memref<1x8x256xf32, #tpu.memory_space<vmem>>, %arg5: memref<1x32x256xf32, #tpu.memory_space<vmem>>) attributes {dimension_semantics = [#tpu.dimension_semantics<parallel>, #tpu.dimension_semantics<parallel>], iteration_bounds = array<i64: 2, 1>, scalar_prefetch = 0 : i64, scratch_operands = 0 : i64, tpu.core_type = #tpu.core_type<tc>, window_params = [{transform_indices = @transform_0, window_bounds = array<i64: 1, 8, 256>}, {transform_indices = @transform_1, window_bounds = array<i64: 1, 16, 256>}, {transform_indices = @transform_2, window_bounds = array<i64: 1, 8, 256>}, {transform_indices = @transform_3, window_bounds = array<i64: 1, 32, 256>}]} {
    %c0 = arith.constant 0 : index
    %c0_0 = arith.constant 0 : index
    %c0_1 = arith.constant 0 : index
    %0 = vector.load %arg2[%c0, %c0_0, %c0_1] : memref<1x8x256xf32, #tpu.memory_space<vmem>>, vector<1x8x256xf32>
    %c0_2 = arith.constant 0 : index
    %c0_3 = arith.constant 0 : index
    %c0_4 = arith.constant 0 : index
    %1 = vector.load %arg5[%c0_2, %c0_3, %c0_4] : memref<1x32x256xf32, #tpu.memory_space<vmem>>, vector<1x8x256xf32>
    tpu.vector_store %arg5[%c0_2, %c0_3, %c0_4], %0 {strides = array<i32>} : memref<1x32x256xf32, #tpu.memory_space<vmem>>, vector<1x8x256xf32>,
    %c0_5 = arith.constant 0 : index
    %c0_6 = arith.constant 0 : index
    %c0_7 = arith.constant 0 : index
    %2 = vector.load %arg3[%c0_5, %c0_6, %c0_7] : memref<1x16x256xf32, #tpu.memory_space<vmem>>, vector<1x16x256xf32>
    %c0_8 = arith.constant 0 : index
    %c8 = arith.constant 8 : index
    %c0_9 = arith.constant 0 : index
    %3 = vector.load %arg5[%c0_8, %c8, %c0_9] : memref<1x32x256xf32, #tpu.memory_space<vmem>>, vector<1x16x256xf32>
    tpu.vector_store %arg5[%c0_8, %c8, %c0_9], %2 {strides = array<i32>} : memref<1x32x256xf32, #tpu.memory_space<vmem>>, vector<1x16x256xf32>,
    %c0_10 = arith.constant 0 : index
    %c0_11 = arith.constant 0 : index
    %c0_12 = arith.constant 0 : index
    %4 = vector.load %arg4[%c0_10, %c0_11, %c0_12] : memref<1x8x256xf32, #tpu.memory_space<vmem>>, vector<1x8x256xf32>
    %c0_13 = arith.constant 0 : index
    %c24 = arith.constant 24 : index
    %c0_14 = arith.constant 0 : index
    %5 = vector.load %arg5[%c0_13, %c24, %c0_14] : memref<1x32x256xf32, #tpu.memory_space<vmem>>, vector<1x8x256xf32>
    tpu.vector_store %arg5[%c0_13, %c24, %c0_14], %4 {strides = array<i32>} : memref<1x32x256xf32, #tpu.memory_space<vmem>>, vector<1x8x256xf32>,
    return
  }
  func.func @transform_0(%arg0: i32, %arg1: i32) -> (i32, i32, i32) {
    %c0_i32 = arith.constant 0 : i32
    %c0_i32_0 = arith.constant 0 : i32
    return %arg0, %c0_i32, %arg1 : i32, i32, i32
  }
  func.func @transform_1(%arg0: i32, %arg1: i32) -> (i32, i32, i32) {
    %c0_i32 = arith.constant 0 : i32
    %c0_i32_0 = arith.constant 0 : i32
    return %arg0, %c0_i32, %arg1 : i32, i32, i32
  }
  func.func @transform_2(%arg0: i32, %arg1: i32) -> (i32, i32, i32) {
    %c0_i32 = arith.constant 0 : i32
    %c0_i32_0 = arith.constant 0 : i32
    return %arg0, %c0_i32, %arg1 : i32, i32, i32
  }
  func.func @transform_3(%arg0: i32, %arg1: i32) -> (i32, i32, i32) {
    %c0_i32 = arith.constant 0 : i32
    %c0_i32_0 = arith.constant 0 : i32
    return %arg0, %c0_i32, %arg1 : i32, i32, i32
  }
}

</mosaic_0001>

<llo_original>
// kernel: tpu_custom_call.1
$region0: #{tpu_custom_call.1}
  #allocation0 [shape = 'u32[]', space=smem, size = 0x4, offset = 0x4, fixed_abs, tag = 'smem constant byte address 0x4 - core index']
  #allocation1 [shape = 'u32[144,128]{1,0:T(1,128)}', space=vmem, size = 0x12000, scoped, tag = 'internal scratch']
  %s0 = inlined_call_operand.hbm [shape: f32[2,8,256], index: 0, kind: input, shape index: {}]
  %s1 = inlined_call_operand.hbm [shape: f32[2,16,256], index: 1, kind: input, shape index: {}]
  %s2 = inlined_call_operand.hbm [shape: f32[2,8,256], index: 2, kind: input, shape index: {}]
  %s3 = inlined_call_operand.hbm [shape: f32[2,32,256], index: 3, kind: output, shape index: {}]
  %s4 = sld [smem:[#allocation0]]
  $region57: #{tpu_custom_call.1} parent=0
    _
  %s6 = ssub.s32 1, %s4
  %s7 = scalar_select 0, %s6, %s4
  $region1: #{tpu_custom_call.1} parent=0
    #allocation2 [shape = 'u8[16384]{0}', space=vmem, size = 0x4000, scoped, tag = 'input window, operand 0']
    #allocation3 [shape = 's32[2]{0}', space=sflag, size = 0x8, scoped, tag = 'scoped memory for tpu_custom_call.1']
    #allocation4 [shape = 's32[2]{0}', space=sflag, size = 0x8, scoped, tag = 'scoped memory for tpu_custom_call.1']
    #allocation5 [shape = 'u8[32768]{0}', space=vmem, size = 0x8000, scoped, tag = 'input window, operand 1']
    #allocation6 [shape = 's32[2]{0}', space=sflag, size = 0x8, scoped, tag = 'scoped memory for tpu_custom_call.1']
    #allocation7 [shape = 'u8[16384]{0}', space=vmem, size = 0x4000, scoped, tag = 'input window, operand 2']
    #allocation8 [shape = 'u8[65536]{0}', space=vmem, size = 0x10000, scoped, tag = 'output window, operand 0']
    %8 = vsyncpa [#allocation3], 0
    %s9 = scalar_lea.sflag [#allocation3], 1
    %10 = vsyncpa %s9, 0
    %11 = vsyncpa [#allocation6], 0
    %s12 = scalar_lea.sflag [#allocation6], 1
    %13 = vsyncpa %s12, 0
    %14 = vsyncpa [#allocation4], 0
    %s15 = scalar_lea.sflag [#allocation4], 1
    %16 = vsyncpa %s15, 0
    loop: start=0, step=1, limit=4
    $region2: #{tpu_custom_call.1} parent=1 // loop_pre_header
      _
    $region3: #{tpu_custom_call.1} parent=1 // loop_header
      %s18 = sphi 0, %s22
      %p19 = scmp.ge.s32.totalorder %s18, 4
      %s25 = sphi 0, %s37
      %s26 = sphi 0, %s33
      %s27 = sphi 0, %s25
      %s28 = sphi 0, %s26
      %s29 = sphi 0, %s27
      %s30 = sphi 0, %s28
      %s42 = sphi 0, %s44
      %s45 = sphi 0, %s42
      %s46 = sphi 0, %s45
      %s62 = sphi 0, %s46
      %s70 = sphi 0, %s72
      %s73 = sphi 0, %s70
      %s74 = sphi 0, %s73
      %s90 = sphi 0, %s74
      %s98 = sphi 0, %s100
      %s101 = sphi 0, %s98
      %s102 = sphi 0, %s101
      %s118 = sphi 0, %s102
      %s126 = sphi 0, %s128
      %s129 = sphi 0, %s126
      %s130 = sphi 0, %s129
      %s146 = sphi 0, %s130
    $region4: #{tpu_custom_call.1} parent=1 // loop_header_branch
      %21 = sbr.rel (%p19) target = $region8
    $region5: #{tpu_custom_call.1} parent=1 // loop_body
      %s23 = ssub.s32 %s18, 1
      %s24 = ssub.s32 %s18, 2
      %s31 = sadd.s32 1, %s26
      %p32 = scmp.ge.s32.totalorder %s31, 1
      %s33 = scalar_select %p32, 0, %s31
      %s34 = sadd.s32 1, %s25
      %s35 = scalar_select %p32, %s34, %s25
      %p36 = scmp.ge.s32.totalorder %s35, 2
      %s37 = scalar_select %p36, 0, %s35
      %s38 = ssub.s32 %s25, %s37
      %s39 = ssub.s32 %s26, %s33
      %s40 = sor.u32 %s38, %s39
      %p41 = scmp.eq.s32.totalorder %s40, 0
      %s43 = sadd.s32 %s42, 1
      %s44 = scalar_select %p41, %s42, %s43
      %p47 = pneg %p41
      %p48 = scmp.eq.s32.totalorder %s18, 1
      %p49 = por %p47, %p48
      %p50 = scmp.ne.s32.totalorder %s42, %s45
      %p51 = scmp.eq.s32.totalorder %s18, 0
      %p52 = por %p50, %p51
      %p53 = scmp.ne.s32.totalorder %s42, %s45
      %p54 = scmp.eq.s32.totalorder %s23, 1
      %p55 = por %p53, %p54
      %p56 = scmp.ne.s32.totalorder %s45, %s46
      %p57 = scmp.eq.s32.totalorder %s23, 0
      %p58 = por %p56, %p57
      %p59 = scmp.ne.s32.totalorder %s45, %s46
      %p60 = scmp.eq.s32.totalorder %s24, 1
      %p61 = por %p59, %p60
      %p63 = scmp.ne.s32.totalorder %s46, %s62
      %p64 = scmp.eq.s32.totalorder %s24, 0
      %p65 = por %p63, %p64
      %s66 = ssub.s32 %s25, %s37
      %s67 = ssub.s32 %s26, %s33
      %s68 = sor.u32 %s66, %s67
      %p69 = scmp.eq.s32.totalorder %s68, 0
      %s71 = sadd.s32 %s70, 1
      %s72 = scalar_select %p69, %s70, %s71
      %p75 = pneg %p69
      %p76 = scmp.eq.s32.totalorder %s18, 1
      %p77 = por %p75, %p76
      %p78 = scmp.ne.s32.totalorder %s70, %s73
      %p79 = scmp.eq.s32.totalorder %s18, 0
      %p80 = por %p78, %p79
      %p81 = scmp.ne.s32.totalorder %s70, %s73
      %p82 = scmp.eq.s32.totalorder %s23, 1
      %p83 = por %p81, %p82
      %p84 = scmp.ne.s32.totalorder %s73, %s74
      %p85 = scmp.eq.s32.totalorder %s23, 0
      %p86 = por %p84, %p85
      %p87 = scmp.ne.s32.totalorder %s73, %s74
      %p88 = scmp.eq.s32.totalorder %s24, 1
      %p89 = por %p87, %p88
      %p91 = scmp.ne.s32.totalorder %s74, %s90
      %p92 = scmp.eq.s32.totalorder %s24, 0
      %p93 = por %p91, %p92
      %s94 = ssub.s32 %s25, %s37
      %s95 = ssub.s32 %s26, %s33
      %s96 = sor.u32 %s94, %s95
      %p97 = scmp.eq.s32.totalorder %s96, 0
      %s99 = sadd.s32 %s98, 1
      %s100 = scalar_select %p97, %s98, %s99
      %p103 = pneg %p97
      %p104 = scmp.eq.s32.totalorder %s18, 1
      %p105 = por %p103, %p104
      %p106 = scmp.ne.s32.totalorder %s98, %s101
      %p107 = scmp.eq.s32.totalorder %s18, 0
      %p108 = por %p106, %p107
      %p109 = scmp.ne.s32.totalorder %s98, %s101
      %p110 = scmp.eq.s32.totalorder %s23, 1
      %p111 = por %p109, %p110
      %p112 = scmp.ne.s32.totalorder %s101, %s102
      %p113 = scmp.eq.s32.totalorder %s23, 0
      %p114 = por %p112, %p113
      %p115 = scmp.ne.s32.totalorder %s101, %s102
      %p116 = scmp.eq.s32.totalorder %s24, 1
      %p117 = por %p115, %p116
      %p119 = scmp.ne.s32.totalorder %s102, %s118
      %p120 = scmp.eq.s32.totalorder %s24, 0
      %p121 = por %p119, %p120
      %s122 = ssub.s32 %s25, %s37
      %s123 = ssub.s32 %s26, %s33
      %s124 = sor.u32 %s122, %s123
      %p125 = scmp.eq.s32.totalorder %s124, 0
      %s127 = sadd.s32 %s126, 1
      %s128 = scalar_select %p125, %s126, %s127
      %p131 = pneg %p125
      %p132 = scmp.eq.s32.totalorder %s18, 1
      %p133 = por %p131, %p132
      %p134 = scmp.ne.s32.totalorder %s126, %s129
      %p135 = scmp.eq.s32.totalorder %s18, 0
      %p136 = por %p134, %p135
      %p137 = scmp.ne.s32.totalorder %s126, %s129
      %p138 = scmp.eq.s32.totalorder %s23, 1
      %p139 = por %p137, %p138
      %p140 = scmp.ne.s32.totalorder %s129, %s130
      %p141 = scmp.eq.s32.totalorder %s23, 0
      %p142 = por %p140, %p141
      %p143 = scmp.ne.s32.totalorder %s129, %s130
      %p144 = scmp.eq.s32.totalorder %s24, 1
      %p145 = por %p143, %p144
      %p147 = scmp.ne.s32.totalorder %s130, %s146
      %p148 = scmp.eq.s32.totalorder %s24, 0
      %p149 = por %p147, %p148
      %p150 = scmp.le.s32.totalorder 1, %s18
      %p151 = scmp.lt.s32.totalorder %s18, 3
      %p152 = pnand %p150, %p151
      %p153 = pneg %p152
      // Predicated region
      $region9: #{tpu_custom_call.1} parent=5 // pred_check
        _
      $region10: #{tpu_custom_call.1} parent=5 // pred_check_branch
        %155 = sbr.rel (%p152) target = $region12
      $region11: #{tpu_custom_call.1} parent=5 // pred_region
        %s156 = ssub.s32 %s18, 1
      $region12: #{tpu_custom_call.1} parent=5 // pred_fallthru
        _
      %p157 = scmp.lt.s32.totalorder %s18, 2
      // Predicated region
      $region13: #{tpu_custom_call.1} parent=5 // pred_check
        %p158 = pneg %p157
      $region14: #{tpu_custom_call.1} parent=5 // pred_check_branch
        %160 = sbr.rel (%p158) target = $region16
      $region15: #{tpu_custom_call.1} parent=5 // pred_region
        // Predicated region
        $region17: #{tpu_custom_call.1} parent=15 // pred_check
          %p161 = pneg %p52
        $region18: #{tpu_custom_call.1} parent=15 // pred_check_branch
          %163 = sbr.rel (%p161) target = $region20
        $region19: #{tpu_custom_call.1} parent=15 // pred_region
          %s164 = sand.u32 %s42, 1
          %s165 = scalar_lea.sflag [#allocation3], %s164
          %s166 = sand.u32 %s42, 1
          %s167 = smul.addr %s166, 16
          %s168 = scalar_lea.vmem [#allocation2], %s167
          %s169 = smul.u32 2, %s26
          %s171 = ssub.s32 256, 256
          %172 = vsyncadd %s165, %s171
          %s173 = smul.addr %s25, 2
          %s174 = sadd.s32 %s169, %s173
          %s175 = smul.addr %s174, 128
          %s176 = scalar_lea.hbm %s0, %s175
          %s178 = sshll.u32 %s168, 4
          %s179 = int_to_ptr.vmem [resolvable:$true] %s178
          %181 = dma.hbm_to_vmem [thread:$0]  %s176, 256, %s179, %s165
        $region20: #{tpu_custom_call.1} parent=15 // pred_fallthru
          _
        // Predicated region
        $region21: #{tpu_custom_call.1} parent=15 // pred_check
          %p182 = pneg %p80
        $region22: #{tpu_custom_call.1} parent=15 // pred_check_branch
          %184 = sbr.rel (%p182) target = $region24
        $region23: #{tpu_custom_call.1} parent=15 // pred_region
          %s185 = sand.u32 %s18, 1
          %s186 = scalar_lea.sflag [#allocation6], %s185
          %s187 = sand.u32 %s70, 1
          %s188 = smul.addr %s187, 32
          %s189 = scalar_lea.vmem [#allocation5], %s188
          %s190 = smul.u32 2, %s26
          %s192 = ssub.s32 512, 512
          %193 = vsyncadd %s186, %s192
          %s194 = smul.addr %s25, 4
          %s195 = sadd.s32 %s190, %s194
          %s196 = smul.addr %s195, 128
          %s197 = scalar_lea.hbm %s1, %s196
          %s198 = sshll.u32 %s189, 4
          %s199 = int_to_ptr.vmem [resolvable:$true] %s198
          %204 = dma.hbm_to_vmem [thread:$0]  %s197, 512, %s199, %s186, 256, 256, 16
        $region24: #{tpu_custom_call.1} parent=15 // pred_fallthru
          _
        // Predicated region
        $region25: #{tpu_custom_call.1} parent=15 // pred_check
          %p205 = pneg %p108
        $region26: #{tpu_custom_call.1} parent=15 // pred_check_branch
          %207 = sbr.rel (%p205) target = $region28
        $region27: #{tpu_custom_call.1} parent=15 // pred_region
          %s208 = sand.u32 %s18, 1
          %s209 = scalar_lea.sflag [#allocation6], %s208
          %s210 = sand.u32 %s98, 1
          %s211 = smul.addr %s210, 16
          %s212 = scalar_lea.vmem [#allocation7], %s211
          %s213 = smul.u32 2, %s26
          %s215 = ssub.s32 256, 256
          %216 = vsyncadd %s209, %s215
          %s217 = smul.addr %s25, 2
          %s218 = sadd.s32 %s213, %s217
          %s219 = smul.addr %s218, 128
          %s220 = scalar_lea.hbm %s2, %s219
          %s222 = sshll.u32 %s212, 4
          %s223 = int_to_ptr.vmem [resolvable:$true] %s222
          %225 = dma.hbm_to_vmem [thread:$0]  %s220, 256, %s223, %s209
        $region28: #{tpu_custom_call.1} parent=15 // pred_fallthru
          _
      $region16: #{tpu_custom_call.1} parent=5 // pred_fallthru
        _
      %p226 = scmp.le.s32.totalorder 1, %s18
      %p227 = scmp.lt.s32.totalorder %s18, 3
      %p228 = pnand %p226, %p227
      %p229 = pneg %p228
      // Predicated region
      $region29: #{tpu_custom_call.1} parent=5 // pred_check
        _
      $region30: #{tpu_custom_call.1} parent=5 // pred_check_branch
        %231 = sbr.rel (%p228) target = $region32
      $region31: #{tpu_custom_call.1} parent=5 // pred_region
        %s232 = ssub.s32 %s18, 1
        %s233 = sand.u32 %s45, 1
        %s234 = scalar_lea.sflag [#allocation3], %s233
        %s235 = sand.u32 %s45, 1
        %s236 = smul.addr %s235, 16
        %s237 = scalar_lea.vmem [#allocation2], %s236
        // Predicated region
        $region33: #{tpu_custom_call.1} parent=31 // pred_check
          %p238 = pneg %p58
        $region34: #{tpu_custom_call.1} parent=31 // pred_check_branch
          %240 = sbr.rel (%p238) target = $region36
        $region35: #{tpu_custom_call.1} parent=31 // pred_region
          %241 = dma.done %s234, 256
        $region36: #{tpu_custom_call.1} parent=31 // pred_fallthru
          _
        %s242 = sand.u32 %s23, 1
        %s243 = scalar_lea.sflag [#allocation6], %s242
        %s244 = sand.u32 %s73, 1
        %s245 = smul.addr %s244, 32
        %s246 = scalar_lea.vmem [#allocation5], %s245
        // Predicated region
        $region37: #{tpu_custom_call.1} parent=31 // pred_check
          %p247 = pneg %p86
        $region38: #{tpu_custom_call.1} parent=31 // pred_check_branch
          %249 = sbr.rel (%p247) target = $region40
        $region39: #{tpu_custom_call.1} parent=31 // pred_region
          %250 = dma.done %s243, 512
        $region40: #{tpu_custom_call.1} parent=31 // pred_fallthru
          _
        %s251 = sand.u32 %s23, 1
        %s252 = scalar_lea.sflag [#allocation6], %s251
        %s253 = sand.u32 %s101, 1
        %s254 = smul.addr %s253, 16
        %s255 = scalar_lea.vmem [#allocation7], %s254
        // Predicated region
        $region41: #{tpu_custom_call.1} parent=31 // pred_check
          %p256 = pneg %p114
        $region42: #{tpu_custom_call.1} parent=31 // pred_check_branch
          %258 = sbr.rel (%p256) target = $region44
        $region43: #{tpu_custom_call.1} parent=31 // pred_region
          %259 = dma.done %s252, 256
        $region44: #{tpu_custom_call.1} parent=31 // pred_fallthru
          _
        %s260 = sand.u32 %s45, 1
        %s261 = scalar_lea.sflag [#allocation3], %s260
        %s262 = sand.u32 %s45, 1
        %s263 = smul.addr %s262, 16
        %s264 = scalar_lea.vmem [#allocation2], %s263
        %p265 = pneg %p58
        %p266 = pneg %p55
        %s267 = sand.u32 %s23, 1
        %s268 = scalar_lea.sflag [#allocation6], %s267
        %s269 = sand.u32 %s73, 1
        %s270 = smul.addr %s269, 32
        %s271 = scalar_lea.vmem [#allocation5], %s270
        %p272 = pneg %p86
        %p273 = pneg %p83
        %s274 = sand.u32 %s23, 1
        %s275 = scalar_lea.sflag [#allocation6], %s274
        %s276 = sand.u32 %s101, 1
        %s277 = smul.addr %s276, 16
        %s278 = scalar_lea.vmem [#allocation7], %s277
        %p279 = pneg %p114
        %p280 = pneg %p111
        %p281 = pneg %p142
        %p282 = pneg %p139
        %s283 = sand.u32 %s129, 1
        %s284 = scalar_lea.sflag [#allocation4], %s283
        %s285 = sand.u32 %s129, 1
        %s286 = smul.addr %s285, 64
        %s287 = scalar_lea.vmem [#allocation8], %s286
        %s288 = smul.u32 2, %s28
        %s289 = smul.u32 2, %s28
        %s290 = smul.u32 2, %s28
        %s291 = smul.u32 2, %s28
        %v292 = vld [vmem:[%s237] sm:$0xff]
        %v293 = vld [vmem:[%s237 + $0x8] sm:$0xff]
        %294 = vst [vmem:[%s287] sm:$0xff] %v292
        %295 = vst [vmem:[%s287 + $0x8] sm:$0xff] %v293
        %v296 = vld [vmem:[%s246] sm:$0xff]
        %v297 = vld [vmem:[%s246 + $0x8] sm:$0xff]
        %v298 = vld [vmem:[%s246 + $0x10] sm:$0xff]
        %v299 = vld [vmem:[%s246 + $0x18] sm:$0xff]
        %300 = vst [vmem:[%s287 + $0x10] sm:$0xff] %v296
        %301 = vst [vmem:[%s287 + $0x18] sm:$0xff] %v297
        %302 = vst [vmem:[%s287 + $0x20] sm:$0xff] %v298
        %303 = vst [vmem:[%s287 + $0x28] sm:$0xff] %v299
        %v304 = vld [vmem:[%s255] sm:$0xff]
        %v305 = vld [vmem:[%s255 + $0x8] sm:$0xff]
        %306 = vst [vmem:[%s287 + $0x30] sm:$0xff] %v304
        %307 = vst [vmem:[%s287 + $0x38] sm:$0xff] %v305
        %s308 = sand.u32 %s129, 1
        %s309 = scalar_lea.sflag [#allocation4], %s308
        %s310 = sand.u32 %s129, 1
        %s311 = smul.addr %s310, 64
        %s312 = scalar_lea.vmem [#allocation8], %s311
        // Predicated region
        $region45: #{tpu_custom_call.1} parent=31 // pred_check
          %p313 = pneg %p139
        $region46: #{tpu_custom_call.1} parent=31 // pred_check_branch
          %315 = sbr.rel (%p313) target = $region48
        $region47: #{tpu_custom_call.1} parent=31 // pred_region
          %s316 = smul.u32 2, %s28
          %s318 = ssub.s32 1024, 1024
          %319 = vsyncadd %s309, %s318
          %s320 = smul.addr %s27, 8
          %s321 = sadd.s32 %s316, %s320
          %s322 = smul.addr %s321, 128
          %s323 = scalar_lea.hbm %s3, %s322
          %s324 = sshll.u32 %s312, 4
          %s325 = int_to_ptr.vmem [resolvable:$true] %s324
          %330 = dma.vmem_to_hbm [thread:$0]  %s325, 1024, %s323, %s309, 256, 256, 16
        $region48: #{tpu_custom_call.1} parent=31 // pred_fallthru
          _
      $region32: #{tpu_custom_call.1} parent=5 // pred_fallthru
        _
      %p331 = scmp.le.s32.totalorder 2, %s18
      // Predicated region
      $region49: #{tpu_custom_call.1} parent=5 // pred_check
        %p332 = pneg %p331
      $region50: #{tpu_custom_call.1} parent=5 // pred_check_branch
        %334 = sbr.rel (%p332) target = $region52
      $region51: #{tpu_custom_call.1} parent=5 // pred_region
        %s335 = ssub.s32 %s18, 2
        // Predicated region
        $region53: #{tpu_custom_call.1} parent=51 // pred_check
          %p336 = pneg %p145
        $region54: #{tpu_custom_call.1} parent=51 // pred_check_branch
          %338 = sbr.rel (%p336) target = $region56
        $region55: #{tpu_custom_call.1} parent=51 // pred_region
          %s339 = sand.u32 %s130, 1
          %s340 = scalar_lea.sflag [#allocation4], %s339
          %s341 = sand.u32 %s130, 1
          %s342 = smul.addr %s341, 64
          %s343 = scalar_lea.vmem [#allocation8], %s342
          %344 = dma.done %s340, 1024
        $region56: #{tpu_custom_call.1} parent=51 // pred_fallthru
          _
      $region52: #{tpu_custom_call.1} parent=5 // pred_fallthru
        _
    $region6: #{tpu_custom_call.1} parent=1 // loop_footer
      %s22 = sadd.s32 1, %s18
    $region7: #{tpu_custom_call.1} parent=1 // loop_footer_branch
      %17 = sbr.rel target = $region3
    $region8: #{tpu_custom_call.1} parent=1 // loop_exit
      _
    %345 = vsyncpa [#allocation3], 1
    %s346 = scalar_lea.sflag [#allocation3], 1
    %347 = vsyncpa %s346, 1
    %348 = vsyncpa [#allocation6], 1
    %s349 = scalar_lea.sflag [#allocation6], 1
    %350 = vsyncpa %s349, 1
    %351 = vsyncpa [#allocation4], 1
    %s352 = scalar_lea.sflag [#allocation4], 1
    %353 = vsyncpa %s352, 1

</llo_original>
